<compile_context>
chip_gen: v6e
topology: v6e:2x2x1
jax: 0.10.0
libtpu: 0.0.40
codegen_flags: <defaults>
</compile_context>

<pallas_src>
import functools

import jax
import jax.numpy as jnp
from jax.experimental import pallas as pl
from jax.experimental.pallas import tpu as pltpu


def _din_attention_kernel(sigmoid_bf16, seq_ref, tgt_ref, bias_ref,
                          w1t_ref, b1_ref, w2t_ref, b2_ref, out_ref):
    seq = seq_ref[...]        # (TB, L, SP) bf16
    tgt = tgt_ref[...]        # (TB, SP)    bf16
    bias = bias_ref[...]      # (TB, L)     f32 additive mask bias (0 or -1e9)
    w1t = w1t_ref[...]        # (SP, SP)    bf16 == padded W1^T
    b1 = b1_ref[...]          # (1, SP)     f32
    w2t = w2t_ref[...]        # (SP, SP)    bf16 == padded W2^T
    b2 = b2_ref[...]          # (1, SP)     f32

    tb, seq_len, sp = seq.shape

    # Linear layers on the MXU (bf16 inputs, f32 accumulation).
    h1 = jnp.dot(seq.reshape(tb * seq_len, sp), w1t,
                 preferred_element_type=jnp.float32).reshape(tb, seq_len, sp) + b1
    h2 = jnp.dot(tgt, w2t, preferred_element_type=jnp.float32) + b2      # (TB, SP)

    # Attention logits: sum over the feature axis of sigmoid(h1 + h2).
    # Padded feature lanes contribute a constant sigmoid(0)=0.5 per row, which
    # cancels in the softmax, so no correction is needed.
    z = h1 + h2[:, None, :]                                              # (TB, L, SP)
    if sigmoid_bf16:
        sig = jax.nn.sigmoid(z.astype(jnp.bfloat16))                     # EUP bf16
    else:
        sig = jax.nn.sigmoid(z)                                          # EUP f32
    logits = jnp.sum(sig.astype(jnp.float32), axis=-1) + bias            # (TB, L)

    # Softmax over the sequence dimension (EUP approximate reciprocal).
    m = jnp.max(logits, axis=-1, keepdims=True)
    e = jnp.exp(logits - m)
    p = e * pl.reciprocal(jnp.sum(e, axis=-1, keepdims=True), approx=True)   # (TB, L)

    # Weighted sum over L of the w1-transformed embeddings: VPU broadcast-multiply
    # + sublane reduce (L=8), keeping the MXU/vex slot free for the main matmul.
    out = jnp.sum(p[:, :, None] * h1, axis=1)                            # (TB, SP)
    out_ref[...] = out.astype(out_ref.dtype)


def din_attention(seq, tgt_3d, mask_3d, w1, b1, w2, b2, *, block_b=None):
    """Glue: mask -> additive bias, pad feature axis to 128 lanes, bf16-stream the
    heavy inputs, grid over batch."""
    B, L, S = seq.shape
    SP = ((S + 127) // 128) * 128          # lane-dense feature width
    pad_s = SP - S

    # torch: mask[:, :-1, :] applied via masked_fill_(mask, -1e9). Pre-bake additively.
    mask = mask_3d[:, :-1, 0]                                        # (B, L) bool
    bias = jnp.where(mask, jnp.float32(-1e9), jnp.float32(0.0))      # (B, L) f32

    tgt = tgt_3d.reshape(B, S)

    # Zero-pad the feature axis; padded lanes of h1/h2 stay exactly 0.
    if pad_s:
        seq = jnp.pad(seq, ((0, 0), (0, 0), (0, pad_s)))
        tgt = jnp.pad(tgt, ((0, 0), (0, pad_s)))
    # bf16 streaming: halves the dominant HBM stream, full-rate bf16 MXU.
    seq = seq.astype(jnp.bfloat16)
    tgt = tgt.astype(jnp.bfloat16)
    w1t = jnp.pad(w1.T, ((0, pad_s), (0, pad_s))).astype(jnp.bfloat16)   # (SP, SP)
    w2t = jnp.pad(w2.T, ((0, pad_s), (0, pad_s))).astype(jnp.bfloat16)
    b1p = jnp.pad(b1, ((0, pad_s),)).reshape(1, SP).astype(jnp.float32)
    b2p = jnp.pad(b2, ((0, pad_s),)).reshape(1, SP).astype(jnp.float32)

    # Hardware-aware sizing.
    vmem_cap = 64 * 1024 * 1024
    try:
        vmem_cap = int(pltpu.get_tpu_info().vmem_capacity_bytes)
    except Exception:
        pass
    vmem_limit = int(min((vmem_cap * 3) // 4, 100 * 1024 * 1024))

    kind = jax.devices()[0].device_kind.lower()
    # bf16 EUP sigmoid only pays off on v6e/v7x; older generations have no bf16 EUP.
    sigmoid_bf16 = not any(t in kind for t in ("v2", "v3", "v4", "v5"))

    if block_b is None:
        # Per-batch-row VMEM bytes: double-buffered bf16 seq block + ~4 f32 compute
        # temporaries of (L, SP) + double-buffered tgt/out/bias.
        per_row = (2 * L * SP * 2) + (4 * L * SP * 4) + 2 * SP * (2 + 4) + 2 * L * 4
        block_b = (vmem_limit // 2) // per_row
        block_b = max(8, min(2048, (block_b // 8) * 8))
        if B >= 16:
            # Keep at least two grid steps so both v7x TensorCores get work.
            half = ((pl.cdiv(B, 2) + 7) // 8) * 8
            block_b = min(block_b, half)
    if block_b >= B:
        block_b = B                          # single block == full dim, always legal
    nb = pl.cdiv(B, block_b)
    Bp = nb * block_b
    if Bp != B:                              # pad batch to a whole number of blocks
        pad_b = Bp - B
        seq = jnp.pad(seq, ((0, pad_b), (0, 0), (0, 0)))
        tgt = jnp.pad(tgt, ((0, pad_b), (0, 0)))
        bias = jnp.pad(bias, ((0, pad_b), (0, 0)))

    kernel = functools.partial(_din_attention_kernel, sigmoid_bf16)

    # Cost estimate using the padded sizes actually executed (bf16 input bytes).
    flops = 2 * Bp * L * SP * SP + 2 * Bp * SP * SP + 4 * Bp * L * SP
    transcendentals = Bp * L * SP + Bp * L
    bytes_accessed = (2 * (Bp * L * SP + Bp * SP + 2 * SP * SP)          # bf16 ins
                      + 4 * (Bp * L + 2 * SP + Bp * SP))                 # f32 bias/out

    out = pl.pallas_call(
        kernel,
        out_shape=jax.ShapeDtypeStruct((Bp, SP), jnp.float32),
        grid_spec=pltpu.PrefetchScalarGridSpec(
            num_scalar_prefetch=0,
            grid=(nb,),
            in_specs=[
                pl.BlockSpec((block_b, L, SP), lambda i: (i, 0, 0)),   # seq
                pl.BlockSpec((block_b, SP), lambda i: (i, 0)),         # tgt
                pl.BlockSpec((block_b, L), lambda i: (i, 0)),          # mask bias
                pl.BlockSpec((SP, SP), lambda i: (0, 0)),              # W1^T (resident)
                pl.BlockSpec((1, SP), lambda i: (0, 0)),               # b1   (resident)
                pl.BlockSpec((SP, SP), lambda i: (0, 0)),              # W2^T (resident)
                pl.BlockSpec((1, SP), lambda i: (0, 0)),               # b2   (resident)
            ],
            out_specs=pl.BlockSpec((block_b, SP), lambda i: (i, 0)),
        ),
        compiler_params=pltpu.CompilerParams(
            dimension_semantics=("parallel",),
            vmem_limit_bytes=vmem_limit,
        ),
        cost_estimate=pl.CostEstimate(
            flops=flops,
            transcendentals=transcendentals,
            bytes_accessed=bytes_accessed,
        ),
    )(seq, tgt, bias, w1t, b1p, w2t, b2p)

    return out[:B, :S]


def _reference(seq, tgt_3d, mask_3d, w1, b1, w2, b2):
    """Plain-JAX f32 reference mirroring the torch forward."""
    B, L, S = seq.shape
    mask = mask_3d[:, :-1, :].reshape(B, L)
    h1 = seq @ w1.T + b1
    h2 = (tgt_3d.reshape(B, S) @ w2.T + b2)[:, None, :]
    logits = jnp.sum(jax.nn.sigmoid(h1 + h2), axis=-1)
    logits = jnp.where(mask, -1e9, logits)
    p = jax.nn.softmax(logits, axis=-1)
    return jnp.sum(p[:, :, None] * h1, axis=1)


def _make_inputs(key, B, L, S):
    k_seq, k_tgt, k_mask, k_w1, k_b1, k_w2, k_b2 = jax.random.split(key, 7)
    seq = jax.random.normal(k_seq, (B, L, S), dtype=jnp.float32)
    tgt = jax.random.normal(k_tgt, (B, 1, S), dtype=jnp.float32)
    # torch code slices mask[:, :-1, :]; interpret mask as (B, L+1, 1) bool.
    mask = jax.random.bernoulli(k_mask, p=0.3, shape=(B, L + 1, 1))
    mask = mask.at[:, 0, 0].set(False)   # keep softmax well defined per row
    bound = 1.0 / jnp.sqrt(jnp.float32(S))
    w1 = jax.random.uniform(k_w1, (S, S), jnp.float32, -bound, bound)
    b1 = jax.random.uniform(k_b1, (S,), jnp.float32, -bound, bound)
    w2 = jax.random.uniform(k_w2, (S, S), jnp.float32, -bound, bound)
    b2 = jax.random.uniform(k_b2, (S,), jnp.float32, -bound, bound)
    return seq, tgt, mask, w1, b1, w2, b2


if __name__ == "__main__":
    embedding_size, num_feature = 32, 3
    S = embedding_size * num_feature          # 96
    key = jax.random.PRNGKey(0)

    # Tolerance accounts for bf16-streamed seq/tgt/weights (and bf16 EUP sigmoid on
    # v6e/v7x) vs. the pure-f32 reference; estimated worst-case |error| ~1.5e-2.
    ATOL = RTOL = 5e-2

    # 1) Small case: single batch block (B == block).
    B, L = 2, 8
    args = _make_inputs(key, B, L, S)
    out = jax.block_until_ready(din_attention(*args))
    ref = _reference(*args)
    assert out.shape == (B, S)
    assert jnp.allclose(out, ref, atol=ATOL, rtol=RTOL), "mismatch vs reference (small)"

    # 2) Gridded case: multiple batch blocks + batch padding (B=20 -> 3 blocks of 8).
    B2, L2 = 20, 8
    args2 = _make_inputs(jax.random.PRNGKey(1), B2, L2, S)
    out2 = jax.block_until_ready(din_attention(*args2, block_b=8))
    ref2 = _reference(*args2)
    assert out2.shape == (B2, S)
    assert jnp.allclose(out2, ref2, atol=ATOL, rtol=RTOL), "mismatch vs reference (gridded)"

    print("KERNEL_OK")
</pallas_src>

<mosaic_0001>
module attributes {stable_mosaic.version = 11 : i64} {
  func.func @_din_attention_kernel(%arg0: i32, %arg1: memref<2x8x128xbf16, #tpu.memory_space<vmem>>, %arg2: memref<2x128xbf16, #tpu.memory_space<vmem>>, %arg3: memref<2x8xf32, #tpu.memory_space<vmem>>, %arg4: memref<128x128xbf16, #tpu.memory_space<vmem>>, %arg5: memref<1x128xf32, #tpu.memory_space<vmem>>, %arg6: memref<128x128xbf16, #tpu.memory_space<vmem>>, %arg7: memref<1x128xf32, #tpu.memory_space<vmem>>, %arg8: memref<2x128xf32, #tpu.memory_space<vmem>>) attributes {dimension_semantics = [#tpu.dimension_semantics<parallel>], iteration_bounds = array<i64: 1>, scalar_prefetch = 0 : i64, scratch_operands = 0 : i64, tpu.core_type = #tpu.core_type<tc>, window_params = [{transform_indices = @transform_0, window_bounds = array<i64: 2, 8, 128>}, {transform_indices = @transform_1, window_bounds = array<i64: 2, 128>}, {transform_indices = @transform_2, window_bounds = array<i64: 2, 8>}, {pipeline_mode = #tpu.pipeline_mode<synchronous>, transform_indices = @transform_3, window_bounds = array<i64: 128, 128>}, {pipeline_mode = #tpu.pipeline_mode<synchronous>, transform_indices = @transform_4, window_bounds = array<i64: 1, 128>}, {pipeline_mode = #tpu.pipeline_mode<synchronous>, transform_indices = @transform_5, window_bounds = array<i64: 128, 128>}, {pipeline_mode = #tpu.pipeline_mode<synchronous>, transform_indices = @transform_6, window_bounds = array<i64: 1, 128>}, {transform_indices = @transform_7, window_bounds = array<i64: 2, 128>}]} {
    %c0 = arith.constant 0 : index
    %c0_0 = arith.constant 0 : index
    %c0_1 = arith.constant 0 : index
    %0 = vector.load %arg1[%c0, %c0_0, %c0_1] : memref<2x8x128xbf16, #tpu.memory_space<vmem>>, vector<2x8x128xbf16>
    %c0_2 = arith.constant 0 : index
    %c0_3 = arith.constant 0 : index
    %1 = vector.load %arg2[%c0_2, %c0_3] : memref<2x128xbf16, #tpu.memory_space<vmem>>, vector<2x128xbf16>
    %c0_4 = arith.constant 0 : index
    %c0_5 = arith.constant 0 : index
    %2 = vector.load %arg3[%c0_4, %c0_5] : memref<2x8xf32, #tpu.memory_space<vmem>>, vector<2x8xf32>
    %c0_6 = arith.constant 0 : index
    %c0_7 = arith.constant 0 : index
    %3 = vector.load %arg4[%c0_6, %c0_7] : memref<128x128xbf16, #tpu.memory_space<vmem>>, vector<128x128xbf16>
    %c0_8 = arith.constant 0 : index
    %c0_9 = arith.constant 0 : index
    %4 = vector.load %arg5[%c0_8, %c0_9] : memref<1x128xf32, #tpu.memory_space<vmem>>, vector<1x128xf32>
    %c0_10 = arith.constant 0 : index
    %c0_11 = arith.constant 0 : index
    %5 = vector.load %arg6[%c0_10, %c0_11] : memref<128x128xbf16, #tpu.memory_space<vmem>>, vector<128x128xbf16>
    %c0_12 = arith.constant 0 : index
    %c0_13 = arith.constant 0 : index
    %6 = vector.load %arg7[%c0_12, %c0_13] : memref<1x128xf32, #tpu.memory_space<vmem>>, vector<1x128xf32>
    %7 = vector.shape_cast %0 : vector<2x8x128xbf16> to vector<16x128xbf16>
    %cst = arith.constant dense<0.000000e+00> : vector<16x128xf32>
    %8 = tpu.matmul %7, %3, %cst {dimension_numbers = #tpu.dot_dimension_numbers<[1], [0], [0], [1], [0, 0, 1, 1], [], []>} : vector<16x128xbf16>, vector<128x128xbf16>, vector<16x128xf32> -> vector<16x128xf32>
    %9 = vector.shape_cast %8 : vector<16x128xf32> to vector<2x8x128xf32>
    %10 = vector.shape_cast %4 : vector<1x128xf32> to vector<1x1x128xf32>
    %11 = vector.broadcast %10 : vector<1x1x128xf32> to vector<2x8x128xf32>
    %12 = arith.addf %9, %11 : vector<2x8x128xf32>
    %cst_14 = arith.constant dense<0.000000e+00> : vector<2x128xf32>
    %13 = tpu.matmul %1, %5, %cst_14 {dimension_numbers = #tpu.dot_dimension_numbers<[1], [0], [0], [1], [0, 0, 1, 1], [], []>} : vector<2x128xbf16>, vector<128x128xbf16>, vector<2x128xf32> -> vector<2x128xf32>
    %14 = vector.broadcast %6 : vector<1x128xf32> to vector<2x128xf32>
    %15 = arith.addf %13, %14 : vector<2x128xf32>
    %16 = vector.shape_cast %15 : vector<2x128xf32> to vector<2x1x128xf32>
    %17 = vector.broadcast %16 : vector<2x1x128xf32> to vector<2x8x128xf32>
    %18 = arith.addf %12, %17 : vector<2x8x128xf32>
    %19 = arith.truncf %18 : vector<2x8x128xf32> to vector<2x8x128xbf16>
    %20 = arith.negf %19 : vector<2x8x128xbf16>
    %21 = math.exp %20 : vector<2x8x128xbf16>
    %cst_15 = arith.constant 1.000000e+00 : bf16
    %22 = vector.broadcast %cst_15 : bf16 to vector<2x8x128xbf16>
    %23 = arith.addf %22, %21 : vector<2x8x128xbf16>
    %24 = arith.divf %22, %23 : vector<2x8x128xbf16>
    %25 = arith.extf %24 : vector<2x8x128xbf16> to vector<2x8x128xf32>
    %cst_16 = arith.constant dense<0.000000e+00> : vector<2x8xf32>
    %26 = vector.multi_reduction <add>, %25, %cst_16 [2] : vector<2x8x128xf32> to vector<2x8xf32>
    %27 = arith.addf %26, %2 : vector<2x8xf32>
    %cst_17 = arith.constant dense<0xFF800000> : vector<2xf32>
    %28 = vector.multi_reduction <maximumf>, %27, %cst_17 [1] : vector<2x8xf32> to vector<2xf32>
    %29 = vector.shape_cast %28 : vector<2xf32> to vector<2x1xf32>
    %30 = vector.broadcast %29 : vector<2x1xf32> to vector<2x8xf32>
    %31 = arith.subf %27, %30 : vector<2x8xf32>
    %32 = math.exp %31 : vector<2x8xf32>
    %cst_18 = arith.constant dense<0.000000e+00> : vector<2xf32>
    %33 = vector.multi_reduction <add>, %32, %cst_18 [1] : vector<2x8xf32> to vector<2xf32>
    %34 = vector.shape_cast %33 : vector<2xf32> to vector<2x1xf32>
    %35 = tpu.reciprocal %34 {approx = true} : vector<2x1xf32> -> vector<2x1xf32>
    %36 = vector.broadcast %35 : vector<2x1xf32> to vector<2x8xf32>
    %37 = arith.mulf %32, %36 : vector<2x8xf32>
    %38 = vector.shape_cast %37 : vector<2x8xf32> to vector<2x8x1xf32>
    %39 = vector.broadcast %38 : vector<2x8x1xf32> to vector<2x8x128xf32>
    %40 = arith.mulf %39, %12 : vector<2x8x128xf32>
    %cst_19 = arith.constant dense<0.000000e+00> : vector<2x128xf32>
    %41 = vector.multi_reduction <add>, %40, %cst_19 [1] : vector<2x8x128xf32> to vector<2x128xf32>
    %c0_20 = arith.constant 0 : index
    %c0_21 = arith.constant 0 : index
    %42 = vector.load %arg8[%c0_20, %c0_21] : memref<2x128xf32, #tpu.memory_space<vmem>>, vector<2x128xf32>
    tpu.vector_store %arg8[%c0_20, %c0_21], %41 {strides = array<i32>} : memref<2x128xf32, #tpu.memory_space<vmem>>, vector<2x128xf32>,
    return
  }
  func.func @transform_0(%arg0: i32) -> (i32, i32, i32) {
    %c0_i32 = arith.constant 0 : i32
    %c0_i32_0 = arith.constant 0 : i32
    %c0_i32_1 = arith.constant 0 : i32
    return %arg0, %c0_i32, %c0_i32_0 : i32, i32, i32
  }
  func.func @transform_1(%arg0: i32) -> (i32, i32) {
    %c0_i32 = arith.constant 0 : i32
    %c0_i32_0 = arith.constant 0 : i32
    return %arg0, %c0_i32 : i32, i32
  }
  func.func @transform_2(%arg0: i32) -> (i32, i32) {
    %c0_i32 = arith.constant 0 : i32
    %c0_i32_0 = arith.constant 0 : i32
    return %arg0, %c0_i32 : i32, i32
  }
  func.func @transform_3(%arg0: i32) -> (i32, i32) {
    %c0_i32 = arith.constant 0 : i32
    %c0_i32_0 = arith.constant 0 : i32
    %c0_i32_1 = arith.constant 0 : i32
    return %c0_i32, %c0_i32_0 : i32, i32
  }
  func.func @transform_4(%arg0: i32) -> (i32, i32) {
    %c0_i32 = arith.constant 0 : i32
    %c0_i32_0 = arith.constant 0 : i32
    %c0_i32_1 = arith.constant 0 : i32
    return %c0_i32, %c0_i32_0 : i32, i32
  }
  func.func @transform_5(%arg0: i32) -> (i32, i32) {
    %c0_i32 = arith.constant 0 : i32
    %c0_i32_0 = arith.constant 0 : i32
    %c0_i32_1 = arith.constant 0 : i32
    return %c0_i32, %c0_i32_0 : i32, i32
  }
  func.func @transform_6(%arg0: i32) -> (i32, i32) {
    %c0_i32 = arith.constant 0 : i32
    %c0_i32_0 = arith.constant 0 : i32
    %c0_i32_1 = arith.constant 0 : i32
    return %c0_i32, %c0_i32_0 : i32, i32
  }
  func.func @transform_7(%arg0: i32) -> (i32, i32) {
    %c0_i32 = arith.constant 0 : i32
    %c0_i32_0 = arith.constant 0 : i32
    return %arg0, %c0_i32 : i32, i32
  }
}

</mosaic_0001>

<llo_original>
// kernel: tpu_custom_call.1
$region0: #{tpu_custom_call.1}
  #allocation0 [shape = 'u32[]', space=smem, size = 0x4, offset = 0x4, fixed_abs, tag = 'smem constant byte address 0x4 - core index']
  #allocation1 [shape = 'u32[144,128]{1,0:T(1,128)}', space=vmem, size = 0x12000, scoped, tag = 'internal scratch']
  %s0 = inlined_call_operand.hbm [shape: bf16[2,8,128], index: 0, kind: input, shape index: {}]
  %s1 = inlined_call_operand.vmem [shape: bf16[2,128], index: 1, kind: input, shape index: {}]
  %s2 = inlined_call_operand.vmem [shape: f32[2,8], index: 2, kind: input, shape index: {}]
  %s3 = inlined_call_operand.hbm [shape: bf16[128,128], index: 3, kind: input, shape index: {}]
  %s4 = inlined_call_operand.vmem [shape: f32[1,128], index: 4, kind: input, shape index: {}]
  %s5 = inlined_call_operand.hbm [shape: bf16[128,128], index: 5, kind: input, shape index: {}]
  %s6 = inlined_call_operand.vmem [shape: f32[1,128], index: 6, kind: input, shape index: {}]
  %s7 = inlined_call_operand.hbm [shape: f32[2,128], index: 7, kind: output, shape index: {}]
  %s8 = sld [smem:[#allocation0]]
  $region50: #{tpu_custom_call.1} parent=0
    _
  %s10 = ssub.s32 1, %s8
  %s11 = scalar_select 0, %s10, %s8
  $region1: #{tpu_custom_call.1} parent=0
    #allocation2 [shape = 'u8[4096]{0}', space=vmem, size = 0x1000, scoped, tag = 'input window, operand 0, single buffered']
    #allocation3 [shape = 's32[1]{0}', space=sflag, size = 0x4, scoped, tag = 'scoped memory for tpu_custom_call.1']
    #allocation4 [shape = 's32[1]{0}', space=sflag, size = 0x4, scoped, tag = 'scoped memory for tpu_custom_call.1']
    #allocation5 [shape = 'u8[32768]{0}', space=vmem, size = 0x8000, scoped, tag = 'input window, operand 3, single buffered']
    #allocation6 [shape = 's32[1]{0}', space=sflag, size = 0x4, scoped, tag = 'scoped memory for tpu_custom_call.1']
    #allocation7 [shape = 'u8[32768]{0}', space=vmem, size = 0x8000, scoped, tag = 'input window, operand 5, single buffered']
    #allocation8 [shape = 'u8[1024]{0}', space=vmem, size = 0x400, scoped, tag = 'output window, operand 0, single buffered']
    %12 = vsyncpa [#allocation3], 0
    %13 = vsyncpa [#allocation6], 0
    %14 = vsyncpa [#allocation4], 0
    // Predicated region
    $region2: #{tpu_custom_call.1} parent=1 // pred_check
      _
    $region3: #{tpu_custom_call.1} parent=1 // pred_check_branch
      %16 = sbr.rel (0) target = $region5
    $region4: #{tpu_custom_call.1} parent=1 // pred_region
      %s18 = ssub.s32 128, 128
      %19 = vsyncadd [#allocation3], %s18
      %s20 = sshll.u32 [#allocation2], 4
      %s21 = int_to_ptr.vmem [resolvable:$true] %s20
      %26 = dma.hbm_to_vmem [thread:$0]  %s0, 128, %s21, [#allocation3], 64, 64, 4
    $region5: #{tpu_custom_call.1} parent=1 // pred_fallthru
      _
    // Predicated region
    $region6: #{tpu_custom_call.1} parent=1 // pred_check
      _
    $region7: #{tpu_custom_call.1} parent=1 // pred_check_branch
      %28 = sbr.rel (0) target = $region9
    $region8: #{tpu_custom_call.1} parent=1 // pred_region
      _
    $region9: #{tpu_custom_call.1} parent=1 // pred_fallthru
      _
    // Predicated region
    $region10: #{tpu_custom_call.1} parent=1 // pred_check
      _
    $region11: #{tpu_custom_call.1} parent=1 // pred_check_branch
      %30 = sbr.rel (0) target = $region13
    $region12: #{tpu_custom_call.1} parent=1 // pred_region
      _
    $region13: #{tpu_custom_call.1} parent=1 // pred_fallthru
      _
    // Predicated region
    $region14: #{tpu_custom_call.1} parent=1 // pred_check
      _
    $region15: #{tpu_custom_call.1} parent=1 // pred_check_branch
      %32 = sbr.rel (0) target = $region17
    $region16: #{tpu_custom_call.1} parent=1 // pred_region
      %s34 = ssub.s32 1024, 1024
      %35 = vsyncadd [#allocation6], %s34
      %s36 = sshll.u32 [#allocation5], 4
      %s37 = int_to_ptr.vmem [resolvable:$true] %s36
      %42 = dma.hbm_to_vmem [thread:$0]  %s3, 1024, %s37, [#allocation6], 64, 64, 4
    $region17: #{tpu_custom_call.1} parent=1 // pred_fallthru
      _
    // Predicated region
    $region18: #{tpu_custom_call.1} parent=1 // pred_check
      _
    $region19: #{tpu_custom_call.1} parent=1 // pred_check_branch
      %44 = sbr.rel (0) target = $region21
    $region20: #{tpu_custom_call.1} parent=1 // pred_region
      _
    $region21: #{tpu_custom_call.1} parent=1 // pred_fallthru
      _
    // Predicated region
    $region22: #{tpu_custom_call.1} parent=1 // pred_check
      _
    $region23: #{tpu_custom_call.1} parent=1 // pred_check_branch
      %46 = sbr.rel (0) target = $region25
    $region24: #{tpu_custom_call.1} parent=1 // pred_region
      %s48 = ssub.s32 1024, 1024
      %49 = vsyncadd [#allocation6], %s48
      %s50 = sshll.u32 [#allocation7], 4
      %s51 = int_to_ptr.vmem [resolvable:$true] %s50
      %56 = dma.hbm_to_vmem [thread:$0]  %s5, 1024, %s51, [#allocation6], 64, 64, 4
    $region25: #{tpu_custom_call.1} parent=1 // pred_fallthru
      _
    // Predicated region
    $region26: #{tpu_custom_call.1} parent=1 // pred_check
      _
    $region27: #{tpu_custom_call.1} parent=1 // pred_check_branch
      %58 = sbr.rel (0) target = $region29
    $region28: #{tpu_custom_call.1} parent=1 // pred_region
      _
    $region29: #{tpu_custom_call.1} parent=1 // pred_fallthru
      _
    // Predicated region
    $region30: #{tpu_custom_call.1} parent=1 // pred_check
      _
    $region31: #{tpu_custom_call.1} parent=1 // pred_check_branch
      %60 = sbr.rel (0) target = $region33
    $region32: #{tpu_custom_call.1} parent=1 // pred_region
      %61 = dma.done [#allocation3], 128
    $region33: #{tpu_custom_call.1} parent=1 // pred_fallthru
      _
    // Predicated region
    $region34: #{tpu_custom_call.1} parent=1 // pred_check
      _
    $region35: #{tpu_custom_call.1} parent=1 // pred_check_branch
      %63 = sbr.rel (0) target = $region37
    $region36: #{tpu_custom_call.1} parent=1 // pred_region
      %64 = dma.done [#allocation6], 1024
    $region37: #{tpu_custom_call.1} parent=1 // pred_fallthru
      _
    // Predicated region
    $region38: #{tpu_custom_call.1} parent=1 // pred_check
      _
    $region39: #{tpu_custom_call.1} parent=1 // pred_check_branch
      %66 = sbr.rel (0) target = $region41
    $region40: #{tpu_custom_call.1} parent=1 // pred_region
      %67 = dma.done [#allocation6], 1024
    $region41: #{tpu_custom_call.1} parent=1 // pred_fallthru
      _
    %v70 = vld [vmem:[#allocation2] sm:$0xf]
    %v71 = vld [vmem:[#allocation2 + $0x4] sm:$0xf]
    %v72 = vld [vmem:[%s1] sm:$0x1]
    %v73 = vld [vmem:[%s2] sm:$0x3]
    %v74 = vld [vmem:[#allocation5] sm:$0xf]
    %v75 = vld [vmem:[#allocation5 + $0x4] sm:$0xf]
    %v76 = vld [vmem:[#allocation5 + $0x8] sm:$0xf]
    %v77 = vld [vmem:[#allocation5 + $0xc] sm:$0xf]
    %v78 = vld [vmem:[#allocation5 + $0x10] sm:$0xf]
    %v79 = vld [vmem:[#allocation5 + $0x14] sm:$0xf]
    %v80 = vld [vmem:[#allocation5 + $0x18] sm:$0xf]
    %v81 = vld [vmem:[#allocation5 + $0x1c] sm:$0xf]
    %v82 = vld [vmem:[#allocation5 + $0x20] sm:$0xf]
    %v83 = vld [vmem:[#allocation5 + $0x24] sm:$0xf]
    %v84 = vld [vmem:[#allocation5 + $0x28] sm:$0xf]
    %v85 = vld [vmem:[#allocation5 + $0x2c] sm:$0xf]
    %v86 = vld [vmem:[#allocation5 + $0x30] sm:$0xf]
    %v87 = vld [vmem:[#allocation5 + $0x34] sm:$0xf]
    %v88 = vld [vmem:[#allocation5 + $0x38] sm:$0xf]
    %v89 = vld [vmem:[#allocation5 + $0x3c] sm:$0xf]
    %v90 = vld [vmem:[%s4] sm:$0x1]
    %v91 = vld [vmem:[#allocation7] sm:$0xf]
    %v92 = vld [vmem:[#allocation7 + $0x4] sm:$0xf]
    %v93 = vld [vmem:[#allocation7 + $0x8] sm:$0xf]
    %v94 = vld [vmem:[#allocation7 + $0xc] sm:$0xf]
    %v95 = vld [vmem:[#allocation7 + $0x10] sm:$0xf]
    %v96 = vld [vmem:[#allocation7 + $0x14] sm:$0xf]
    %v97 = vld [vmem:[#allocation7 + $0x18] sm:$0xf]
    %v98 = vld [vmem:[#allocation7 + $0x1c] sm:$0xf]
    %v99 = vld [vmem:[#allocation7 + $0x20] sm:$0xf]
    %v100 = vld [vmem:[#allocation7 + $0x24] sm:$0xf]
    %v101 = vld [vmem:[#allocation7 + $0x28] sm:$0xf]
    %v102 = vld [vmem:[#allocation7 + $0x2c] sm:$0xf]
    %v103 = vld [vmem:[#allocation7 + $0x30] sm:$0xf]
    %v104 = vld [vmem:[#allocation7 + $0x34] sm:$0xf]
    %v105 = vld [vmem:[#allocation7 + $0x38] sm:$0xf]
    %v106 = vld [vmem:[#allocation7 + $0x3c] sm:$0xf]
    %v107 = vld [vmem:[%s6] sm:$0x1]
    %v110 = vunpack.c.l.b16 %v70
    %v111 = vunpack.c.l.b16 %v71
    %v112 = vpack.c.b16 %v111, %v110
    %v130 = vunpack.c.l.b16 %v74
    %v131 = vunpack.c.l.b16 %v75
    %v132 = vunpack.c.l.b16 %v76
    %v133 = vunpack.c.l.b16 %v77
    %v134 = vunpack.c.l.b16 %v78
    %v135 = vunpack.c.l.b16 %v79
    %v136 = vunpack.c.l.b16 %v80
    %v137 = vunpack.c.l.b16 %v81
    %v138 = vunpack.c.l.b16 %v82
    %v139 = vunpack.c.l.b16 %v83
    %v140 = vunpack.c.l.b16 %v84
    %v141 = vunpack.c.l.b16 %v85
    %v142 = vunpack.c.l.b16 %v86
    %v143 = vunpack.c.l.b16 %v87
    %v144 = vunpack.c.l.b16 %v88
    %v145 = vunpack.c.l.b16 %v89
    %v146 = vpack.c.b16 %v131, %v130
    %v147 = vpack.c.b16 %v133, %v132
    %v148 = vpack.c.b16 %v135, %v134
    %v149 = vpack.c.b16 %v137, %v136
    %v150 = vpack.c.b16 %v139, %v138
    %v151 = vpack.c.b16 %v141, %v140
    %v152 = vpack.c.b16 %v143, %v142
    %v153 = vpack.c.b16 %v145, %v144
    %162 = vmatprep.subr.bf16.mxu0 0
    %163 = vmatpush1.bf16.msra.mxu0 %v153
    %164 = vmatprep.subr.bf16.mxu0 0
    %165 = vmatpush1.bf16.msra.mxu0 %v152
    %166 = vmatprep.subr.bf16.mxu0 0
    %167 = vmatpush1.bf16.msra.mxu0 %v151
    %168 = vmatprep.subr.bf16.mxu0 0
    %169 = vmatpush1.bf16.msra.mxu0 %v150
    %170 = vmatprep.subr.bf16.mxu0 0
    %171 = vmatpush1.bf16.msra.mxu0 %v149
    %172 = vmatprep.subr.bf16.mxu0 0
    %173 = vmatpush1.bf16.msra.mxu0 %v148
    %174 = vmatprep.subr.bf16.mxu0 0
    %175 = vmatpush1.bf16.msra.mxu0 %v147
    %176 = vmatprep.subr.bf16.mxu0 0
    %177 = vmatpush1.bf16.msra.mxu0 %v146
    %178 = vmatprep.subr.bf16.mxu0 0
    %179 = vmatpush2.bf16.msra.mxu0 0
    %180 = vmatprep.subr.bf16.mxu0 0
    %181 = vmatpush2.bf16.msra.mxu0 0
    %182 = vmatprep.subr.bf16.mxu0 0
    %183 = vmatpush2.bf16.msra.mxu0 0
    %184 = vmatprep.subr.bf16.mxu0 0
    %185 = vmatpush2.bf16.msra.mxu0 0
    %186 = vmatprep.subr.bf16.mxu0 0
    %187 = vmatpush2.bf16.msra.mxu0 0
    %188 = vmatprep.subr.bf16.mxu0 0
    %189 = vmatpush2.bf16.msra.mxu0 0
    %190 = vmatprep.subr.bf16.mxu0 0
    %191 = vmatpush2.bf16.msra.mxu0 0
    %192 = vmatprep.subr.bf16.mxu0 0
    %193 = vmatpush2.bf16.msra.mxu0 0
    %194 = vmatprep.mubr.bf16.mxu0 0
    %195 = vmatmul.mubr.bf16.gmra.mxu0 %v112
    %v196 = vpop.f32.mrf.mxu0
    %v197 = vadd.f32 0.0, %v196
    %v198 = vpop.f32.mrf.mxu0
    %v199 = vpop.f32.mrf.mxu0
    %v200 = vadd.f32 0.0, %v199
    %v201 = vpop.f32.mrf.mxu0
    %202 = vdwg.mxu0
    %v204 = vlaneseq
    %v205 = vshrl.u32 %v204, 7
    %v206 = vsub.s32 0, %v205
    %v207 = vrot.slane %v90, %v206
    %v209 = vadd.f32 %v197, %v207
    %v210 = vadd.f32 %v200, %v207
    %v212 = vlaneseq
    %v213 = vshrl.u32 %v212, 7
    %v214 = vsub.s32 0, %v213
    %v215 = vrot.slane %v107, %v214
    %v233 = vunpack.c.l.b16 %v91
    %v234 = vunpack.c.l.b16 %v92
    %v235 = vunpack.c.l.b16 %v93
    %v236 = vunpack.c.l.b16 %v94
    %v237 = vunpack.c.l.b16 %v95
    %v238 = vunpack.c.l.b16 %v96
    %v239 = vunpack.c.l.b16 %v97
    %v240 = vunpack.c.l.b16 %v98
    %v241 = vunpack.c.l.b16 %v99
    %v242 = vunpack.c.l.b16 %v100
    %v243 = vunpack.c.l.b16 %v101
    %v244 = vunpack.c.l.b16 %v102
    %v245 = vunpack.c.l.b16 %v103
    %v246 = vunpack.c.l.b16 %v104
    %v247 = vunpack.c.l.b16 %v105
    %v248 = vunpack.c.l.b16 %v106
    %v249 = vpack.c.b16 %v234, %v233
    %v250 = vpack.c.b16 %v236, %v235
    %v251 = vpack.c.b16 %v238, %v237
    %v252 = vpack.c.b16 %v240, %v239
    %v253 = vpack.c.b16 %v242, %v241
    %v254 = vpack.c.b16 %v244, %v243
    %v255 = vpack.c.b16 %v246, %v245
    %v256 = vpack.c.b16 %v248, %v247
    %265 = vmatprep.subr.bf16.mxu0 0
    %266 = vmatpush1.bf16.msra.mxu0 %v256
    %267 = vmatprep.subr.bf16.mxu0 0
    %268 = vmatpush1.bf16.msra.mxu0 %v255
    %269 = vmatprep.subr.bf16.mxu0 0
    %270 = vmatpush1.bf16.msra.mxu0 %v254
    %271 = vmatprep.subr.bf16.mxu0 0
    %272 = vmatpush1.bf16.msra.mxu0 %v253
    %273 = vmatprep.subr.bf16.mxu0 0
    %274 = vmatpush1.bf16.msra.mxu0 %v252
    %275 = vmatprep.subr.bf16.mxu0 0
    %276 = vmatpush1.bf16.msra.mxu0 %v251
    %277 = vmatprep.subr.bf16.mxu0 0
    %278 = vmatpush1.bf16.msra.mxu0 %v250
    %279 = vmatprep.subr.bf16.mxu0 0
    %280 = vmatpush1.bf16.msra.mxu0 %v249
    %281 = vmatprep.subr.bf16.mxu0 0
    %282 = vmatpush2.bf16.msra.mxu0 0
    %283 = vmatprep.subr.bf16.mxu0 0
    %284 = vmatpush2.bf16.msra.mxu0 0
    %285 = vmatprep.subr.bf16.mxu0 0
    %286 = vmatpush2.bf16.msra.mxu0 0
    %287 = vmatprep.subr.bf16.mxu0 0
    %288 = vmatpush2.bf16.msra.mxu0 0
    %289 = vmatprep.subr.bf16.mxu0 0
    %290 = vmatpush2.bf16.msra.mxu0 0
    %291 = vmatprep.subr.bf16.mxu0 0
    %292 = vmatpush2.bf16.msra.mxu0 0
    %293 = vmatprep.subr.bf16.mxu0 0
    %294 = vmatpush2.bf16.msra.mxu0 0
    %295 = vmatprep.subr.bf16.mxu0 0
    %296 = vmatpush2.bf16.msra.mxu0 0
    %297 = vmatprep.mubr.bf16.mxu0 0
    %298 = vmatmul.mubr.bf16.gmra.mxu0 %v72
    %v299 = vpop.f32.mrf.mxu0
    %v300 = vadd.f32 %v215, %v299
    %v301 = vpop.f32.mrf.mxu0
    %v302 = vpop.f32.mrf.mxu0
    %v303 = vpop.f32.mrf.mxu0
    %304 = vdwg.mxu0
    %v307 = vunpack.c.l.s4 1966171168
    %v308 = vunpack.c.0.s8 %v307
    %v309 = vlaneseq
    %v310 = vshrl.u32 %v309, 7
    %v311 = vsub.s32 %v308, %v310
    %v312 = vrot.slane %v300, %v311
    %v313 = vcombine.high %v312, %v312
    %v315 = vunpack.c.l.s4 1966171168
    %v316 = vunpack.c.0.s8 %v315
    %v317 = vlaneseq
    %v318 = vshrl.u32 %v317, 7
    %v319 = vsub.s32 %v316, %v318
    %v320 = vrot.slane %v312, %v319
    %v322 = vunpack.c.l.s4 1966171168
    %v323 = vunpack.c.0.s8 %v322
    %v324 = vlaneseq
    %v325 = vshrl.u32 %v324, 7
    %v326 = vsub.s32 %v323, %v325
    %v327 = vrot.slane %v313, %v326
    %v328 = vlaneseq
    %v329 = vshrl.u32 %v328, 7
    %v330 = vsub.s32 0, %v329
    %v331 = vrot.slane %v320, %v330
    %v332 = vlaneseq
    %v333 = vshrl.u32 %v332, 7
    %v334 = vsub.s32 0, %v333
    %v335 = vrot.slane %v327, %v334
    %v338 = vadd.f32 %v209, %v331
    %v339 = vadd.f32 %v210, %v335
    %v340 = vpack.c.bf16 %v338, %v338
    %v341 = vpack.c.bf16 %v339, %v339
    %v342 = vxor.u32 %v340, 2147516416
    %v343 = vxor.u32 %v341, 2147516416
    %v345 = vmul.bf16 %v342, 1069105081
    %v346 = vpow.bf16.pop %v345
    %v348 = vmul.bf16 %v343, 1069105081
    %v349 = vpow.bf16.pop %v348
    %v350 = vadd.bf16 %v346, 1065369472
    %v351 = vadd.bf16 %v349, 1065369472
    %v352 = vrcp.bf16.pop %v350
    %v353 = vmul.bf16 1065369472, %v352
    %v354 = vrcp.bf16.pop %v351
    %v355 = vmul.bf16 1065369472, %v354
    %v356 = vunpack.c.l.bf16 %v353
    %v357 = vunpack.c.l.bf16 %v355
    %358 = vadd.xlane.f32.xlu0 %v356
    %v359 = vpop.xlane.xlu0 %358
    %360 = vadd.xlane.f32.xlu0 %v357
    %v361 = vpop.xlane.xlu0 %360
    %v363 = vlaneseq
    %v364 = vshrl.u32 %v363, 7
    %v365 = vsub.s32 0, %v364
    %v366 = vrot.slane %v73, %v365
    %368 = vbcast.lane.b32.xlu0 %v366, 256
    %v369 = vpop.permute.xlu0 %368
    %v370 = vlaneseq
    %v371 = vshrl.u32 %v370, 7
    %v372 = vsub.s32 1, %v371
    %v373 = vrot.slane %v73, %v372
    %375 = vbcast.lane.b32.xlu0 %v373, 256
    %v376 = vpop.permute.xlu0 %375
    %v379 = vadd.f32 %v359, %v369
    %v380 = vadd.f32 %v361, %v376
    %383 = vset.pattern.permute.xlu0 0
    %384 = vperm.xlu0 %383, %v379
    %v385 = vpop.permute.xlu0 %384
    %386 = vset.pattern.permute.xlu0 0
    %387 = vperm.xlu0 %386, %v380
    %v388 = vpop.permute.xlu0 %387
    %v389 = vlaneseq
    %v390 = vand.u32 %v389, 127
    %v391 = vlaneseq
    %v392 = vshrl.u32 %v391, 7
    %v393 = vsub.s32 %v390, %v392
    %v394 = vrot.slane %v385, %v393
    %v395 = vlaneseq
    %v396 = vshrl.u32 %v395, 7
    %v397 = vsub.s32 %v390, %v396
    %v398 = vrot.slane %v388, %v397
    %vm399 = vcmask 1041409
    %v400 = vsel %vm399, %v398, %v394
    %vm402 = vcmask 58368
    %v403 = vsel %vm402, %v400, -inf
    %404 = vmax.xlane.f32.xlu0 %v403
    %v405 = vpop.xlane.xlu0 %404
    %v407 = vlaneseq
    %v408 = vshrl.u32 %v407, 7
    %v409 = vsub.s32 0, %v408
    %v410 = vrot.slane %v405, %v409
    %v411 = vlaneseq
    %v412 = vshrl.u32 %v411, 7
    %v413 = vsub.s32 1, %v412
    %v414 = vrot.slane %v405, %v413
    %v417 = vsub.f32 %v379, %v410
    %v418 = vsub.f32 %v380, %v414
    %v419 = vmul.f32 %v417, 1.442695
    %v420 = vpow.pop %v419
    %v421 = vmul.f32 %v418, 1.442695
    %v422 = vpow.pop %v421
    %425 = vset.pattern.permute.xlu0 0
    %426 = vperm.xlu0 %425, %v420
    %v427 = vpop.permute.xlu0 %426
    %428 = vset.pattern.permute.xlu0 0
    %429 = vperm.xlu0 %428, %v422
    %v430 = vpop.permute.xlu0 %429
    %v431 = vlaneseq
    %v432 = vshrl.u32 %v431, 7
    %v433 = vsub.s32 %v390, %v432
    %v434 = vrot.slane %v427, %v433
    %v435 = vlaneseq
    %v436 = vshrl.u32 %v435, 7
    %v437 = vsub.s32 %v390, %v436
    %v438 = vrot.slane %v430, %v437
    %v439 = vsel %vm399, %v438, %v434
    %v441 = vsel %vm402, %v439, 0.0
    %442 = vadd.xlane.f32.xlu0 %v441
    %v443 = vpop.xlane.xlu0 %442
    %v444 = vrcp.pop %v443
    %v446 = vlaneseq
    %v447 = vshrl.u32 %v446, 7
    %v448 = vsub.s32 0, %v447
    %v449 = vrot.slane %v444, %v448
    %v450 = vlaneseq
    %v451 = vshrl.u32 %v450, 7
    %v452 = vsub.s32 1, %v451
    %v453 = vrot.slane %v444, %v452
    %v456 = vmul.f32 %v420, %v449
    %v457 = vmul.f32 %v422, %v453
    %459 = vset.pattern.permute.xlu0 0
    %460 = vperm.xlu0 %459, %v456
    %v461 = vpop.permute.xlu0 %460
    %464 = vset.pattern.permute.xlu0 0
    %465 = vperm.xlu0 %464, %v457
    %v466 = vpop.permute.xlu0 %465
    %v468 = vmul.f32 %v461, %v209
    %v469 = vmul.f32 %v466, %v210
    %v470 = vrot.slane %v468, 4
    %v471 = vadd.f32 %v468, %v470
    %v472 = vrot.slane %v471, 2
    %v473 = vadd.f32 %v471, %v472
    %v474 = vrot.slane %v473, 1
    %v475 = vadd.f32 %v473, %v474
    %v476 = vrot.slane %v469, 4
    %v477 = vadd.f32 %v469, %v476
    %v478 = vrot.slane %v477, 2
    %v479 = vadd.f32 %v477, %v478
    %v480 = vrot.slane %v479, 1
    %v481 = vadd.f32 %v479, %v480
    %v484 = vsel %vm399, %v481, %v475
    %486 = vst [vmem:[#allocation8] sm:$0x3] %v484
    // Predicated region
    $region42: #{tpu_custom_call.1} parent=1 // pred_check
      _
    $region43: #{tpu_custom_call.1} parent=1 // pred_check_branch
      %488 = sbr.rel (0) target = $region45
    $region44: #{tpu_custom_call.1} parent=1 // pred_region
      %s490 = ssub.s32 32, 32
      %491 = vsyncadd [#allocation4], %s490
      %s493 = sshll.u32 [#allocation8], 4
      %s494 = int_to_ptr.vmem [resolvable:$true] %s493
      %496 = dma.vmem_to_hbm [thread:$0]  %s494, 32, %s7, [#allocation4]
    $region45: #{tpu_custom_call.1} parent=1 // pred_fallthru
      _
    // Predicated region
    $region46: #{tpu_custom_call.1} parent=1 // pred_check
      _
    $region47: #{tpu_custom_call.1} parent=1 // pred_check_branch
      %498 = sbr.rel (0) target = $region49
    $region48: #{tpu_custom_call.1} parent=1 // pred_region
      %499 = dma.done [#allocation4], 32
    $region49: #{tpu_custom_call.1} parent=1 // pred_fallthru
      _
    %500 = vsyncpa [#allocation3], 1
    %501 = vsyncpa [#allocation6], 1
    %502 = vsyncpa [#allocation4], 1

</llo_original>
